<compile_context>
chip_gen: v6e
topology: v6e:2x2x1
jax: 0.10.0
libtpu: 0.0.40
codegen_flags: <defaults>
</compile_context>

<pallas_src>
import jax
import jax.numpy as jnp
from jax.experimental import pallas as pl
from jax.experimental.pallas import tpu as pltpu

IN_FEATURES = 11
HIDDEN = 10
OUT_FEATURES = 11
MAX_TILE_B = 8192   # rows per grid step (multiple of 8); VMEM-safe on v5e/v6e/v7x


def _round_up(n, m):
    return (n + m - 1) // m * m


def _mlp_kernel(x_ref, w1_ref, b1_ref, w2_ref, b2_ref, o_ref):
    # One (tile_b, 11) batch tile; both layers + bias + ReLU fused.
    x = x_ref[...]                                                  # (tile_b, 11)
    h = jnp.dot(x, w1_ref[...], preferred_element_type=jnp.float32)  # (tile_b, 10)
    h = jnp.maximum(h + b1_ref[...], 0.0)                           # ReLU
    out = jnp.dot(h, w2_ref[...], preferred_element_type=jnp.float32)  # (tile_b, 11)
    o_ref[...] = (out + b2_ref[...]).astype(o_ref.dtype)


@jax.jit
def net_forward(x, w1, b1, w2, b2):
    """x: (B, 11) f32.  w1: (11, 10), b1: (1, 10), w2: (10, 11), b2: (1, 11)."""
    B = x.shape[0]

    # Grid-count-first tiling: minimal batch padding, even grid (>=2) when
    # multi-step so v7x's two TensorCores both get work.
    n_steps = max(1, pl.cdiv(B, MAX_TILE_B))
    if n_steps > 1 and n_steps % 2 != 0:
        n_steps += 1
    tile_b = _round_up(pl.cdiv(B, n_steps), 8)
    b_pad = n_steps * tile_b

    # Zero-pad only the (small) batch remainder so no uninitialized rows are read.
    x_p = x if b_pad == B else jnp.pad(x, ((0, b_pad - B), (0, 0)))

    cost = pl.CostEstimate(
        flops=2 * b_pad * (IN_FEATURES * HIDDEN + HIDDEN * OUT_FEATURES),
        transcendentals=0,
        bytes_accessed=4 * (b_pad * (IN_FEATURES + OUT_FEATURES)
                            + IN_FEATURES * HIDDEN + HIDDEN
                            + HIDDEN * OUT_FEATURES + OUT_FEATURES),
    )

    out_p = pl.pallas_call(
        _mlp_kernel,
        out_shape=jax.ShapeDtypeStruct((b_pad, OUT_FEATURES), x.dtype),
        grid=(n_steps,),
        in_specs=[
            pl.BlockSpec((tile_b, IN_FEATURES), lambda i: (i, 0)),      # x tile (pipelined)
            pl.BlockSpec((IN_FEATURES, HIDDEN), lambda i: (0, 0)),      # w1 resident
            pl.BlockSpec((1, HIDDEN), lambda i: (0, 0)),                # b1 resident
            pl.BlockSpec((HIDDEN, OUT_FEATURES), lambda i: (0, 0)),     # w2 resident
            pl.BlockSpec((1, OUT_FEATURES), lambda i: (0, 0)),          # b2 resident
        ],
        out_specs=pl.BlockSpec((tile_b, OUT_FEATURES), lambda i: (i, 0)),
        compiler_params=pltpu.CompilerParams(
            dimension_semantics=("parallel",),       # megacore sharding on v7x
            vmem_limit_bytes=48 * 1024 * 1024,       # clears v5e's 16 MiB default at 8k tiles
        ),
        cost_estimate=cost,
    )(x_p, w1, b1, w2, b2)

    return out_p if b_pad == B else out_p[:B]


def prepare_params(hl_w, hl_b, ol_w, ol_b):
    """Convert PyTorch-shaped params (hl_w (10,11), hl_b (10,), ol_w (11,10),
    ol_b (11,)) into (in, out)-major matrices + row-vector biases."""
    w1 = hl_w.T.astype(jnp.float32)                 # (11, 10)
    b1 = hl_b.reshape(1, HIDDEN).astype(jnp.float32)
    w2 = ol_w.T.astype(jnp.float32)                 # (10, 11)
    b2 = ol_b.reshape(1, OUT_FEATURES).astype(jnp.float32)
    return w1, b1, w2, b2


def init_params(key):
    """Deterministic init mirroring nn.Linear parameter shapes."""
    k1, k2, k3, k4 = jax.random.split(key, 4)
    bound1 = 1.0 / jnp.sqrt(IN_FEATURES)
    bound2 = 1.0 / jnp.sqrt(HIDDEN)
    hl_w = jax.random.uniform(k1, (HIDDEN, IN_FEATURES), jnp.float32, -bound1, bound1)
    hl_b = jax.random.uniform(k2, (HIDDEN,), jnp.float32, -bound1, bound1)
    ol_w = jax.random.uniform(k3, (OUT_FEATURES, HIDDEN), jnp.float32, -bound2, bound2)
    ol_b = jax.random.uniform(k4, (OUT_FEATURES,), jnp.float32, -bound2, bound2)
    return hl_w, hl_b, ol_w, ol_b


def reference_forward(x, hl_w, hl_b, ol_w, ol_b):
    h = x @ hl_w.T + hl_b
    a = jnp.maximum(h, 0.0)
    return a @ ol_w.T + ol_b


if __name__ == "__main__":
    key = jax.random.PRNGKey(0)
    k_params, k_x = jax.random.split(key)

    hl_w, hl_b, ol_w, ol_b = init_params(k_params)
    w1, b1, w2, b2 = prepare_params(hl_w, hl_b, ol_w, ol_b)

    B = 2
    x = jax.random.normal(k_x, (B, IN_FEATURES), jnp.float32)

    out = jax.block_until_ready(net_forward(x, w1, b1, w2, b2))

    ref = reference_forward(x, hl_w, hl_b, ol_w, ol_b)
    assert out.shape == (B, OUT_FEATURES)
    assert jnp.allclose(out, ref, atol=1e-5, rtol=1e-5)

    print("KERNEL_OK")
</pallas_src>

<mosaic_0001>
module attributes {stable_mosaic.version = 11 : i64} {
  func.func @_mlp_kernel(%arg0: i32, %arg1: memref<8x11xf32, #tpu.memory_space<vmem>>, %arg2: memref<11x10xf32, #tpu.memory_space<vmem>>, %arg3: memref<1x10xf32, #tpu.memory_space<vmem>>, %arg4: memref<10x11xf32, #tpu.memory_space<vmem>>, %arg5: memref<1x11xf32, #tpu.memory_space<vmem>>, %arg6: memref<8x11xf32, #tpu.memory_space<vmem>>) attributes {dimension_semantics = [#tpu.dimension_semantics<parallel>], iteration_bounds = array<i64: 1>, scalar_prefetch = 0 : i64, scratch_operands = 0 : i64, tpu.core_type = #tpu.core_type<tc>, window_params = [{transform_indices = @transform_0, window_bounds = array<i64: 8, 11>}, {pipeline_mode = #tpu.pipeline_mode<synchronous>, transform_indices = @transform_1, window_bounds = array<i64: 11, 10>}, {pipeline_mode = #tpu.pipeline_mode<synchronous>, transform_indices = @transform_2, window_bounds = array<i64: 1, 10>}, {pipeline_mode = #tpu.pipeline_mode<synchronous>, transform_indices = @transform_3, window_bounds = array<i64: 10, 11>}, {pipeline_mode = #tpu.pipeline_mode<synchronous>, transform_indices = @transform_4, window_bounds = array<i64: 1, 11>}, {transform_indices = @transform_5, window_bounds = array<i64: 8, 11>}]} {
    %c0 = arith.constant 0 : index
    %c0_0 = arith.constant 0 : index
    %0 = vector.load %arg1[%c0, %c0_0] : memref<8x11xf32, #tpu.memory_space<vmem>>, vector<8x11xf32>
    %c0_1 = arith.constant 0 : index
    %c0_2 = arith.constant 0 : index
    %1 = vector.load %arg2[%c0_1, %c0_2] : memref<11x10xf32, #tpu.memory_space<vmem>>, vector<11x10xf32>
    %cst = arith.constant dense<0.000000e+00> : vector<8x10xf32>
    %2 = tpu.matmul %0, %1, %cst {dimension_numbers = #tpu.dot_dimension_numbers<[1], [0], [0], [1], [0, 0, 1, 1], [], []>} : vector<8x11xf32>, vector<11x10xf32>, vector<8x10xf32> -> vector<8x10xf32>
    %c0_3 = arith.constant 0 : index
    %c0_4 = arith.constant 0 : index
    %3 = vector.load %arg3[%c0_3, %c0_4] : memref<1x10xf32, #tpu.memory_space<vmem>>, vector<1x10xf32>
    %4 = vector.broadcast %3 : vector<1x10xf32> to vector<8x10xf32>
    %5 = arith.addf %2, %4 : vector<8x10xf32>
    %cst_5 = arith.constant 0.000000e+00 : f32
    %6 = vector.broadcast %cst_5 : f32 to vector<8x10xf32>
    %7 = arith.maximumf %5, %6 : vector<8x10xf32>
    %c0_6 = arith.constant 0 : index
    %c0_7 = arith.constant 0 : index
    %8 = vector.load %arg4[%c0_6, %c0_7] : memref<10x11xf32, #tpu.memory_space<vmem>>, vector<10x11xf32>
    %cst_8 = arith.constant dense<0.000000e+00> : vector<8x11xf32>
    %9 = tpu.matmul %7, %8, %cst_8 {dimension_numbers = #tpu.dot_dimension_numbers<[1], [0], [0], [1], [0, 0, 1, 1], [], []>} : vector<8x10xf32>, vector<10x11xf32>, vector<8x11xf32> -> vector<8x11xf32>
    %c0_9 = arith.constant 0 : index
    %c0_10 = arith.constant 0 : index
    %10 = vector.load %arg5[%c0_9, %c0_10] : memref<1x11xf32, #tpu.memory_space<vmem>>, vector<1x11xf32>
    %11 = vector.broadcast %10 : vector<1x11xf32> to vector<8x11xf32>
    %12 = arith.addf %9, %11 : vector<8x11xf32>
    %c0_11 = arith.constant 0 : index
    %c0_12 = arith.constant 0 : index
    %13 = vector.load %arg6[%c0_11, %c0_12] : memref<8x11xf32, #tpu.memory_space<vmem>>, vector<8x11xf32>
    tpu.vector_store %arg6[%c0_11, %c0_12], %12 {strides = array<i32>} : memref<8x11xf32, #tpu.memory_space<vmem>>, vector<8x11xf32>,
    return
  }
  func.func @transform_0(%arg0: i32) -> (i32, i32) {
    %c0_i32 = arith.constant 0 : i32
    %c0_i32_0 = arith.constant 0 : i32
    return %arg0, %c0_i32 : i32, i32
  }
  func.func @transform_1(%arg0: i32) -> (i32, i32) {
    %c0_i32 = arith.constant 0 : i32
    %c0_i32_0 = arith.constant 0 : i32
    %c0_i32_1 = arith.constant 0 : i32
    return %c0_i32, %c0_i32_0 : i32, i32
  }
  func.func @transform_2(%arg0: i32) -> (i32, i32) {
    %c0_i32 = arith.constant 0 : i32
    %c0_i32_0 = arith.constant 0 : i32
    %c0_i32_1 = arith.constant 0 : i32
    return %c0_i32, %c0_i32_0 : i32, i32
  }
  func.func @transform_3(%arg0: i32) -> (i32, i32) {
    %c0_i32 = arith.constant 0 : i32
    %c0_i32_0 = arith.constant 0 : i32
    %c0_i32_1 = arith.constant 0 : i32
    return %c0_i32, %c0_i32_0 : i32, i32
  }
  func.func @transform_4(%arg0: i32) -> (i32, i32) {
    %c0_i32 = arith.constant 0 : i32
    %c0_i32_0 = arith.constant 0 : i32
    %c0_i32_1 = arith.constant 0 : i32
    return %c0_i32, %c0_i32_0 : i32, i32
  }
  func.func @transform_5(%arg0: i32) -> (i32, i32) {
    %c0_i32 = arith.constant 0 : i32
    %c0_i32_0 = arith.constant 0 : i32
    return %arg0, %c0_i32 : i32, i32
  }
}

</mosaic_0001>

<llo_original>
// kernel: net_forward.1
$region0: #{net_forward.1}
  #allocation0 [shape = 'u32[]', space=smem, size = 0x4, offset = 0x4, fixed_abs, tag = 'smem constant byte address 0x4 - core index']
  #allocation1 [shape = 'u32[144,128]{1,0:T(1,128)}', space=vmem, size = 0x12000, scoped, tag = 'internal scratch']
  %s0 = inlined_call_operand.vmem [shape: f32[8,11], index: 0, kind: input, shape index: {}]
  %s1 = inlined_call_operand.hbm [shape: f32[11,10], index: 1, kind: input, shape index: {}]
  %s2 = inlined_call_operand.hbm [shape: f32[1,10], index: 2, kind: input, shape index: {}]
  %s3 = inlined_call_operand.vmem [shape: f32[10,11], index: 3, kind: input, shape index: {}]
  %s4 = inlined_call_operand.vmem [shape: f32[1,11], index: 4, kind: input, shape index: {}]
  %s5 = inlined_call_operand.vmem [shape: f32[8,11], index: 5, kind: output, shape index: {}]
  %s6 = sld [smem:[#allocation0]]
  $region38: #{net_forward.1} parent=0
    _
  %s8 = ssub.s32 1, %s6
  %s9 = scalar_select 0, %s8, %s6
  $region1: #{net_forward.1} parent=0
    #allocation2 [shape = 'u8[8192]{0}', space=vmem, size = 0x2000, scoped, tag = 'input window, operand 1, single buffered']
    #allocation3 [shape = 's32[1]{0}', space=sflag, size = 0x4, scoped, tag = 'scoped memory for net_forward.1']
    #allocation4 [shape = 'u8[512]{0}', space=vmem, size = 0x400, scoped, tag = 'input window, operand 2, single buffered']
    #allocation5 [shape = 's32[1]{0}', space=sflag, size = 0x4, scoped, tag = 'scoped memory for net_forward.1']
    %10 = vsyncpa [#allocation3], 0
    %11 = vsyncpa [#allocation5], 0
    // Predicated region
    $region2: #{net_forward.1} parent=1 // pred_check
      _
    $region3: #{net_forward.1} parent=1 // pred_check_branch
      %13 = sbr.rel (0) target = $region5
    $region4: #{net_forward.1} parent=1 // pred_region
      _
    $region5: #{net_forward.1} parent=1 // pred_fallthru
      _
    // Predicated region
    $region6: #{net_forward.1} parent=1 // pred_check
      _
    $region7: #{net_forward.1} parent=1 // pred_check_branch
      %15 = sbr.rel (0) target = $region9
    $region8: #{net_forward.1} parent=1 // pred_region
      %s17 = ssub.s32 256, 256
      %18 = vsyncadd [#allocation3], %s17
      %s19 = sshll.u32 [#allocation2], 4
      %s20 = int_to_ptr.vmem [resolvable:$true] %s19
      %25 = dma.hbm_to_vmem [thread:$0]  %s1, 256, %s20, [#allocation3], 128, 128, 8
    $region9: #{net_forward.1} parent=1 // pred_fallthru
      _
    // Predicated region
    $region10: #{net_forward.1} parent=1 // pred_check
      _
    $region11: #{net_forward.1} parent=1 // pred_check_branch
      %27 = sbr.rel (0) target = $region13
    $region12: #{net_forward.1} parent=1 // pred_region
      %s29 = ssub.s32 16, 16
      %30 = vsyncadd [#allocation5], %s29
      %s32 = sshll.u32 [#allocation4], 4
      %s33 = int_to_ptr.vmem [resolvable:$true] %s32
      %35 = dma.hbm_to_vmem [thread:$0]  %s2, 16, %s33, [#allocation5]
    $region13: #{net_forward.1} parent=1 // pred_fallthru
      _
    // Predicated region
    $region14: #{net_forward.1} parent=1 // pred_check
      _
    $region15: #{net_forward.1} parent=1 // pred_check_branch
      %37 = sbr.rel (0) target = $region17
    $region16: #{net_forward.1} parent=1 // pred_region
      _
    $region17: #{net_forward.1} parent=1 // pred_fallthru
      _
    // Predicated region
    $region18: #{net_forward.1} parent=1 // pred_check
      _
    $region19: #{net_forward.1} parent=1 // pred_check_branch
      %39 = sbr.rel (0) target = $region21
    $region20: #{net_forward.1} parent=1 // pred_region
      _
    $region21: #{net_forward.1} parent=1 // pred_fallthru
      _
    // Predicated region
    $region22: #{net_forward.1} parent=1 // pred_check
      _
    $region23: #{net_forward.1} parent=1 // pred_check_branch
      %41 = sbr.rel (0) target = $region25
    $region24: #{net_forward.1} parent=1 // pred_region
      %42 = dma.done [#allocation3], 256
    $region25: #{net_forward.1} parent=1 // pred_fallthru
      _
    // Predicated region
    $region26: #{net_forward.1} parent=1 // pred_check
      _
    $region27: #{net_forward.1} parent=1 // pred_check_branch
      %44 = sbr.rel (0) target = $region29
    $region28: #{net_forward.1} parent=1 // pred_region
      %45 = dma.done [#allocation5], 16
    $region29: #{net_forward.1} parent=1 // pred_fallthru
      _
    %v46 = vld [vmem:[%s0] sm:$0xff]
    %v47 = vld [vmem:[#allocation2] sm:$0xff]
    %v48 = vld [vmem:[#allocation2 + $0x8] sm:$0x7]
    %v49 = vld [vmem:[#allocation4] sm:$0x1]
    %v51 = vlaneseq
    %v52 = vshrl.u32 %v51, 7
    %v53 = vsub.s32 0, %v52
    %v54 = vrot.slane %v49, %v53
    %vm56 = vcmask 89088
    %v58 = vsel %vm56, %v46, 0
    %vm60 = vcmask 1042432
    %v62 = vsel %vm60, %v48, 0
    %64 = vmatprep.subr.mxu0 0.0
    %65 = vmatpush1.msra.mxu0 0.0
    %66 = vmatprep.subr.mxu0 0.0
    %67 = vmatpush1.msra.mxu0 0.0
    %68 = vmatprep.subr.mxu0 0.0
    %69 = vmatpush1.msra.mxu0 0.0
    %70 = vmatprep.subr.mxu0 0.0
    %71 = vmatpush1.msra.mxu0 0.0
    %72 = vmatprep.subr.mxu0 0.0
    %73 = vmatpush1.msra.mxu0 0.0
    %74 = vmatprep.subr.mxu0 0.0
    %75 = vmatpush1.msra.mxu0 0.0
    %76 = vmatprep.subr.mxu0 0.0
    %77 = vmatpush1.msra.mxu0 0.0
    %78 = vmatprep.subr.mxu0 0.0
    %79 = vmatpush1.msra.mxu0 0.0
    %80 = vmatprep.subr.mxu0 0.0
    %81 = vmatpush1.msra.mxu0 0.0
    %82 = vmatprep.subr.mxu0 0.0
    %83 = vmatpush1.msra.mxu0 0.0
    %84 = vmatprep.subr.mxu0 0.0
    %85 = vmatpush1.msra.mxu0 0.0
    %86 = vmatprep.subr.mxu0 0.0
    %87 = vmatpush1.msra.mxu0 0.0
    %88 = vmatprep.subr.mxu0 0.0
    %89 = vmatpush1.msra.mxu0 0.0
    %90 = vmatprep.subr.mxu0 0.0
    %91 = vmatpush1.msra.mxu0 0.0
    %92 = vmatprep.subr.mxu0 0.0
    %93 = vmatpush1.msra.mxu0 %v62
    %94 = vmatprep.subr.mxu0 0.0
    %95 = vmatpush1.msra.mxu0 %v47
    %96 = vmatprep.subr.mxu0 0.0
    %97 = vmatpush2.msra.mxu0 0.0
    %98 = vmatprep.subr.mxu0 0.0
    %99 = vmatpush2.msra.mxu0 0.0
    %100 = vmatprep.subr.mxu0 0.0
    %101 = vmatpush2.msra.mxu0 0.0
    %102 = vmatprep.subr.mxu0 0.0
    %103 = vmatpush2.msra.mxu0 0.0
    %104 = vmatprep.subr.mxu0 0.0
    %105 = vmatpush2.msra.mxu0 0.0
    %106 = vmatprep.subr.mxu0 0.0
    %107 = vmatpush2.msra.mxu0 0.0
    %108 = vmatprep.subr.mxu0 0.0
    %109 = vmatpush2.msra.mxu0 0.0
    %110 = vmatprep.subr.mxu0 0.0
    %111 = vmatpush2.msra.mxu0 0.0
    %112 = vmatprep.subr.mxu0 0.0
    %113 = vmatpush2.msra.mxu0 0.0
    %114 = vmatprep.subr.mxu0 0.0
    %115 = vmatpush2.msra.mxu0 0.0
    %116 = vmatprep.subr.mxu0 0.0
    %117 = vmatpush2.msra.mxu0 0.0
    %118 = vmatprep.subr.mxu0 0.0
    %119 = vmatpush2.msra.mxu0 0.0
    %120 = vmatprep.subr.mxu0 0.0
    %121 = vmatpush2.msra.mxu0 0.0
    %122 = vmatprep.subr.mxu0 0.0
    %123 = vmatpush2.msra.mxu0 0.0
    %124 = vmatprep.subr.mxu0 0.0
    %125 = vmatpush2.msra.mxu0 0.0
    %126 = vmatprep.subr.mxu0 0.0
    %127 = vmatpush2.msra.mxu0 0.0
    %128 = vmatprep.mubr.f32.mxu0 0.0
    %129 = vmatmul.mubr.f32.gmra.mxu0 %v58
    %v130 = vpop.f32.mrf.mxu0
    %v131 = vadd.f32 %v54, %v130
    %v132 = vpop.f32.mrf.mxu0
    %133 = vdwg.mxu0
    %v134 = vmax.f32 %v131, 0.0
    %v135 = vld [vmem:[%s3] sm:$0xff]
    %v136 = vld [vmem:[%s3 + $0x8] sm:$0x3]
    %v137 = vld [vmem:[%s4] sm:$0x1]
    %v139 = vlaneseq
    %v140 = vshrl.u32 %v139, 7
    %v141 = vsub.s32 0, %v140
    %v142 = vrot.slane %v137, %v141
    %vm144 = vcmask 80896
    %v146 = vsel %vm144, %v134, 0
    %vm148 = vcmask 1041408
    %v150 = vsel %vm148, %v136, 0
    %152 = vmatprep.subr.mxu0 0.0
    %153 = vmatpush1.msra.mxu0 0.0
    %154 = vmatprep.subr.mxu0 0.0
    %155 = vmatpush1.msra.mxu0 0.0
    %156 = vmatprep.subr.mxu0 0.0
    %157 = vmatpush1.msra.mxu0 0.0
    %158 = vmatprep.subr.mxu0 0.0
    %159 = vmatpush1.msra.mxu0 0.0
    %160 = vmatprep.subr.mxu0 0.0
    %161 = vmatpush1.msra.mxu0 0.0
    %162 = vmatprep.subr.mxu0 0.0
    %163 = vmatpush1.msra.mxu0 0.0
    %164 = vmatprep.subr.mxu0 0.0
    %165 = vmatpush1.msra.mxu0 0.0
    %166 = vmatprep.subr.mxu0 0.0
    %167 = vmatpush1.msra.mxu0 0.0
    %168 = vmatprep.subr.mxu0 0.0
    %169 = vmatpush1.msra.mxu0 0.0
    %170 = vmatprep.subr.mxu0 0.0
    %171 = vmatpush1.msra.mxu0 0.0
    %172 = vmatprep.subr.mxu0 0.0
    %173 = vmatpush1.msra.mxu0 0.0
    %174 = vmatprep.subr.mxu0 0.0
    %175 = vmatpush1.msra.mxu0 0.0
    %176 = vmatprep.subr.mxu0 0.0
    %177 = vmatpush1.msra.mxu0 0.0
    %178 = vmatprep.subr.mxu0 0.0
    %179 = vmatpush1.msra.mxu0 0.0
    %180 = vmatprep.subr.mxu0 0.0
    %181 = vmatpush1.msra.mxu0 %v150
    %182 = vmatprep.subr.mxu0 0.0
    %183 = vmatpush1.msra.mxu0 %v135
    %184 = vmatprep.subr.mxu0 0.0
    %185 = vmatpush2.msra.mxu0 0.0
    %186 = vmatprep.subr.mxu0 0.0
    %187 = vmatpush2.msra.mxu0 0.0
    %188 = vmatprep.subr.mxu0 0.0
    %189 = vmatpush2.msra.mxu0 0.0
    %190 = vmatprep.subr.mxu0 0.0
    %191 = vmatpush2.msra.mxu0 0.0
    %192 = vmatprep.subr.mxu0 0.0
    %193 = vmatpush2.msra.mxu0 0.0
    %194 = vmatprep.subr.mxu0 0.0
    %195 = vmatpush2.msra.mxu0 0.0
    %196 = vmatprep.subr.mxu0 0.0
    %197 = vmatpush2.msra.mxu0 0.0
    %198 = vmatprep.subr.mxu0 0.0
    %199 = vmatpush2.msra.mxu0 0.0
    %200 = vmatprep.subr.mxu0 0.0
    %201 = vmatpush2.msra.mxu0 0.0
    %202 = vmatprep.subr.mxu0 0.0
    %203 = vmatpush2.msra.mxu0 0.0
    %204 = vmatprep.subr.mxu0 0.0
    %205 = vmatpush2.msra.mxu0 0.0
    %206 = vmatprep.subr.mxu0 0.0
    %207 = vmatpush2.msra.mxu0 0.0
    %208 = vmatprep.subr.mxu0 0.0
    %209 = vmatpush2.msra.mxu0 0.0
    %210 = vmatprep.subr.mxu0 0.0
    %211 = vmatpush2.msra.mxu0 0.0
    %212 = vmatprep.subr.mxu0 0.0
    %213 = vmatpush2.msra.mxu0 0.0
    %214 = vmatprep.subr.mxu0 0.0
    %215 = vmatpush2.msra.mxu0 0.0
    %216 = vmatprep.mubr.f32.mxu0 0.0
    %217 = vmatmul.mubr.f32.gmra.mxu0 %v146
    %v218 = vpop.f32.mrf.mxu0
    %v219 = vadd.f32 %v142, %v218
    %v220 = vpop.f32.mrf.mxu0
    %221 = vdwg.mxu0
    %222 = vst.msk [vmem:[%s5] sm:$0xff] %vm56, %v219
    // Predicated region
    $region30: #{net_forward.1} parent=1 // pred_check
      _
    $region31: #{net_forward.1} parent=1 // pred_check_branch
      %224 = sbr.rel (0) target = $region33
    $region32: #{net_forward.1} parent=1 // pred_region
      _
    $region33: #{net_forward.1} parent=1 // pred_fallthru
      _
    // Predicated region
    $region34: #{net_forward.1} parent=1 // pred_check
      _
    $region35: #{net_forward.1} parent=1 // pred_check_branch
      %226 = sbr.rel (0) target = $region37
    $region36: #{net_forward.1} parent=1 // pred_region
      _
    $region37: #{net_forward.1} parent=1 // pred_fallthru
      _
    %227 = vsyncpa [#allocation3], 1
    %228 = vsyncpa [#allocation5], 1

</llo_original>
